<compile_context>
chip_gen: v5e
topology: v5e:2x2
jax: 0.10.0
libtpu: 0.0.40
codegen_flags: <defaults>
</compile_context>

<pallas_src>
import jax
import jax.numpy as jnp
from jax.experimental import pallas as pl
from jax.experimental.pallas import tpu as pltpu


def _round_up(x, m):
    return ((x + m - 1) // m) * m


def _linear_kernel(x_ref, w_ref, b_ref, o_ref, acc_ref):
    """Grid step (b: batch tile, j: class tile, k: K tile) of y = x @ W + b."""
    k = pl.program_id(2)

    @pl.when(k == 0)
    def _init():
        # Fold the bias into the accumulator init (saves an epilogue pass).
        acc_ref[...] = jnp.broadcast_to(b_ref[...], acc_ref.shape)

    # x arrives in its source dtype (f32); cast to bf16 on the VPU (free in a
    # mem-bound kernel) and run the canonical (M,K)x(K,N) MXU matmul against
    # the pre-transposed bf16 weight tile. Accumulation stays f32.
    acc_ref[...] += jnp.dot(
        x_ref[...].astype(jnp.bfloat16),
        w_ref[...],
        preferred_element_type=jnp.float32,
    )

    @pl.when(k == pl.num_programs(2) - 1)
    def _finalize():
        o_ref[...] = acc_ref[...].astype(o_ref.dtype)


def _plan_tiles(n_class, n_element, tk, tn):
    """Lane-dense tile sizes and padded extents for the class / K axes."""
    if tn is None:
        tn = 256 if n_class >= 256 else 128
    tn = min(tn, _round_up(n_class, 128))
    tk = min(tk, _round_up(n_element, 128))
    nc_pad = _round_up(n_class, tn)
    k_pad = _round_up(n_element, tk)
    return tn, nc_pad, tk, k_pad


def prepare_linear_params(weight, bias, *, tk=2048, tn=None):
    """One-time weight/bias prep, hoisted out of the forward path.

    weight: (n_class, n_element) f32, bias: (n_class,) f32.
    Returns a dict with the bf16, padded, pre-transposed weight (k_pad, nc_pad),
    the padded f32 bias (1, nc_pad), and the tiling plan.
    """
    n_class, n_element = weight.shape
    tn, nc_pad, tk, k_pad = _plan_tiles(n_class, n_element, tk, tn)

    w_t = jnp.pad(
        weight.astype(jnp.bfloat16),
        ((0, nc_pad - n_class), (0, k_pad - n_element)),
    ).T  # (k_pad, nc_pad) bf16, computed once at init
    b_p = jnp.pad(bias.astype(jnp.float32), (0, nc_pad - n_class)).reshape(1, nc_pad)

    return {
        "w": w_t,
        "b": b_p,
        "n_class": n_class,
        "n_element": n_element,
        "tn": tn,
        "nc_pad": nc_pad,
        "tk": tk,
        "k_pad": k_pad,
    }


def _vmem_limit_bytes(need_bytes):
    """Per-generation VMEM cap: ~40 MiB on v7x (64 MiB/TC), 48 MiB on v5e/v6e."""
    try:
        cap_phys = pltpu.get_tpu_info().vmem_capacity_bytes
    except Exception:  # interpret mode / unknown backend
        cap_phys = 128 << 20
    cap = min((cap_phys * 5) // 8, 48 << 20)
    return int(min(max(4 * need_bytes, 8 << 20), cap))


def dummy_backbone_forward(x_nchw, params):
    """x_nchw: (B, C, H, W) -> (B, n_class) f32, matching DummyBackbone."""
    B = x_nchw.shape[0]
    n_class, n_element = params["n_class"], params["n_element"]
    tn, nc_pad = params["tn"], params["nc_pad"]
    tk, k_pad = params["tk"], params["k_pad"]
    n_ct, kt = nc_pad // tn, k_pad // tk

    # Batch tiling: only when the batch is big enough to feed both v7x
    # TensorCores; small batches stay a single sublane-resident tile.
    if B >= 256:
        tb = 128
        b_pad = _round_up(B, tb)
    else:
        tb, b_pad = B, B
    n_bt = b_pad // tb

    # x path: reshape is a view; pad only when actually required (a no-op for
    # tile-aligned shapes). The bf16 cast happens inside the kernel.
    x_flat = x_nchw.reshape(B, n_element)
    if k_pad != n_element or b_pad != B:
        x_flat = jnp.pad(x_flat, ((0, b_pad - B), (0, k_pad - n_element)))

    x_bytes = x_flat.dtype.itemsize
    blk_bytes = (
        tb * tk * x_bytes    # x block (native dtype)
        + tk * tn * 2        # W block (bf16)
        + tn * 4             # bias block (f32)
        + tb * tn * 4        # out block (f32)
    )
    vmem_limit = _vmem_limit_bytes(2 * blk_bytes + tb * tn * 4)

    cost = pl.CostEstimate(
        flops=2 * B * n_element * n_class,
        transcendentals=0,
        bytes_accessed=x_bytes * B * n_element
        + 2 * n_element * n_class
        + 4 * B * n_class,
    )

    out = pl.pallas_call(
        _linear_kernel,
        out_shape=jax.ShapeDtypeStruct((b_pad, nc_pad), jnp.float32),
        grid=(n_bt, n_ct, kt),
        in_specs=[
            pl.BlockSpec((tb, tk), lambda b, j, k: (b, k)),   # x: (batch, K) tiles
            pl.BlockSpec((tk, tn), lambda b, j, k: (k, j)),   # W^T: (K, class) tiles
            pl.BlockSpec((1, tn), lambda b, j, k: (0, j)),    # bias: class tile
        ],
        out_specs=pl.BlockSpec((tb, tn), lambda b, j, k: (b, j)),
        scratch_shapes=[pltpu.VMEM((tb, tn), jnp.float32)],
        compiler_params=pltpu.CompilerParams(
            dimension_semantics=("parallel", "parallel", "arbitrary"),
            vmem_limit_bytes=vmem_limit,
        ),
        cost_estimate=cost,
    )(x_flat, params["w"], params["b"])

    return out[:B, :n_class]


def init_params(key, input_shape, n_class):
    """Mirror torch.nn.Linear default init (uniform +-1/sqrt(fan_in))."""
    n_element = input_shape[0] * input_shape[1] * input_shape[2]
    k_w, k_b = jax.random.split(key)
    bound = 1.0 / jnp.sqrt(jnp.float32(n_element))
    weight = jax.random.uniform(
        k_w, (n_class, n_element), dtype=jnp.float32, minval=-bound, maxval=bound
    )
    bias = jax.random.uniform(
        k_b, (n_class,), dtype=jnp.float32, minval=-bound, maxval=bound
    )
    return weight, bias


if __name__ == "__main__":
    key = jax.random.PRNGKey(0)
    k_x, k_p = jax.random.split(key)

    # Small shapes consistent with the module: input_shape=(C, H, W), n_class.
    B, C, H, W = 2, 4, 16, 16
    n_class = 10
    input_shape = (C, H, W)

    x = jax.random.normal(k_x, (B, C, H, W), dtype=jnp.float32)
    weight, bias = init_params(k_p, input_shape, n_class)

    # One-time (hoisted) weight prep, then the per-call forward.
    params = prepare_linear_params(weight, bias)
    params = jax.tree_util.tree_map(
        lambda a: jax.block_until_ready(a) if isinstance(a, jax.Array) else a, params
    )

    y = dummy_backbone_forward(x, params)
    y = jax.block_until_ready(y)
    assert y.shape == (B, n_class)

    # Reference with the same bf16 streaming (f32 accumulation) — tight check.
    x_bf = x.reshape(B, -1).astype(jnp.bfloat16).astype(jnp.float32)
    w_bf = weight.astype(jnp.bfloat16).astype(jnp.float32)
    y_ref = x_bf @ w_bf.T + bias
    assert jnp.allclose(y, y_ref, atol=1e-3, rtol=1e-3)

    # Sanity vs full-precision torch-Linear math (bf16 streaming tolerance).
    y_full = x.reshape(B, -1) @ weight.T + bias
    assert jnp.allclose(y, y_full, atol=5e-2, rtol=5e-2)

    print("KERNEL_OK")
</pallas_src>

<mosaic_0001>
module attributes {stable_mosaic.version = 11 : i64} {
  func.func @_linear_kernel(%arg0: i32, %arg1: i32, %arg2: i32, %arg3: memref<2x1024xf32, #tpu.memory_space<vmem>>, %arg4: memref<1024x128xbf16, #tpu.memory_space<vmem>>, %arg5: memref<1x128xf32, #tpu.memory_space<vmem>>, %arg6: memref<2x128xf32, #tpu.memory_space<vmem>>, %arg7: memref<2x128xf32, #tpu.memory_space<vmem>>) attributes {dimension_semantics = [#tpu.dimension_semantics<parallel>, #tpu.dimension_semantics<parallel>, #tpu.dimension_semantics<arbitrary>], iteration_bounds = array<i64: 1, 1, 1>, scalar_prefetch = 0 : i64, scratch_operands = 1 : i64, tpu.core_type = #tpu.core_type<tc>, window_params = [{transform_indices = @transform_0, window_bounds = array<i64: 2, 1024>}, {transform_indices = @transform_1, window_bounds = array<i64: 1024, 128>}, {transform_indices = @transform_2, window_bounds = array<i64: 1, 128>}, {transform_indices = @transform_3, window_bounds = array<i64: 2, 128>}]} {
    %c0_i32 = arith.constant 0 : i32
    %0 = arith.cmpi eq, %arg2, %c0_i32 : i32
    %1 = arith.extui %0 : i1 to i32
    %c0_i32_0 = arith.constant 0 : i32
    %2 = arith.cmpi ne, %1, %c0_i32_0 : i32
    scf.if %2 {
      %c0_10 = arith.constant 0 : index
      %c0_11 = arith.constant 0 : index
      %13 = vector.load %arg5[%c0_10, %c0_11] : memref<1x128xf32, #tpu.memory_space<vmem>>, vector<1x128xf32>
      %14 = vector.shape_cast %13 : vector<1x128xf32> to vector<1x128xf32>
      %15 = vector.broadcast %14 : vector<1x128xf32> to vector<2x128xf32>
      %c0_12 = arith.constant 0 : index
      %c0_13 = arith.constant 0 : index
      %16 = vector.load %arg7[%c0_12, %c0_13] : memref<2x128xf32, #tpu.memory_space<vmem>>, vector<2x128xf32>
      tpu.vector_store %arg7[%c0_12, %c0_13], %15 {strides = array<i32>} : memref<2x128xf32, #tpu.memory_space<vmem>>, vector<2x128xf32>,
    } else {
    }
    %c0 = arith.constant 0 : index
    %c0_1 = arith.constant 0 : index
    %3 = vector.load %arg7[%c0, %c0_1] : memref<2x128xf32, #tpu.memory_space<vmem>>, vector<2x128xf32>
    %c0_2 = arith.constant 0 : index
    %c0_3 = arith.constant 0 : index
    %4 = vector.load %arg3[%c0_2, %c0_3] : memref<2x1024xf32, #tpu.memory_space<vmem>>, vector<2x1024xf32>
    %5 = arith.truncf %4 : vector<2x1024xf32> to vector<2x1024xbf16>
    %c0_4 = arith.constant 0 : index
    %c0_5 = arith.constant 0 : index
    %6 = vector.load %arg4[%c0_4, %c0_5] : memref<1024x128xbf16, #tpu.memory_space<vmem>>, vector<1024x128xbf16>
    %cst = arith.constant dense<0.000000e+00> : vector<2x128xf32>
    %7 = tpu.matmul %5, %6, %cst {dimension_numbers = #tpu.dot_dimension_numbers<[1], [0], [0], [1], [0, 0, 1, 1], [], []>} : vector<2x1024xbf16>, vector<1024x128xbf16>, vector<2x128xf32> -> vector<2x128xf32>
    %8 = arith.addf %3, %7 : vector<2x128xf32>
    %c0_6 = arith.constant 0 : index
    %c0_7 = arith.constant 0 : index
    %9 = vector.load %arg7[%c0_6, %c0_7] : memref<2x128xf32, #tpu.memory_space<vmem>>, vector<2x128xf32>
    tpu.vector_store %arg7[%c0_6, %c0_7], %8 {strides = array<i32>} : memref<2x128xf32, #tpu.memory_space<vmem>>, vector<2x128xf32>,
    %c0_i32_8 = arith.constant 0 : i32
    %10 = arith.cmpi eq, %arg2, %c0_i32_8 : i32
    %11 = arith.extui %10 : i1 to i32
    %c0_i32_9 = arith.constant 0 : i32
    %12 = arith.cmpi ne, %11, %c0_i32_9 : i32
    scf.if %12 {
      %c0_10 = arith.constant 0 : index
      %c0_11 = arith.constant 0 : index
      %13 = vector.load %arg7[%c0_10, %c0_11] : memref<2x128xf32, #tpu.memory_space<vmem>>, vector<2x128xf32>
      %c0_12 = arith.constant 0 : index
      %c0_13 = arith.constant 0 : index
      %14 = vector.load %arg6[%c0_12, %c0_13] : memref<2x128xf32, #tpu.memory_space<vmem>>, vector<2x128xf32>
      tpu.vector_store %arg6[%c0_12, %c0_13], %13 {strides = array<i32>} : memref<2x128xf32, #tpu.memory_space<vmem>>, vector<2x128xf32>,
    } else {
    }
    return
  }
  func.func @transform_0(%arg0: i32, %arg1: i32, %arg2: i32) -> (i32, i32) {
    %c0_i32 = arith.constant 0 : i32
    return %arg0, %arg2 : i32, i32
  }
  func.func @transform_1(%arg0: i32, %arg1: i32, %arg2: i32) -> (i32, i32) {
    %c0_i32 = arith.constant 0 : i32
    return %arg2, %arg1 : i32, i32
  }
  func.func @transform_2(%arg0: i32, %arg1: i32, %arg2: i32) -> (i32, i32) {
    %c0_i32 = arith.constant 0 : i32
    %c0_i32_0 = arith.constant 0 : i32
    return %c0_i32, %arg1 : i32, i32
  }
  func.func @transform_3(%arg0: i32, %arg1: i32, %arg2: i32) -> (i32, i32) {
    %c0_i32 = arith.constant 0 : i32
    return %arg0, %arg1 : i32, i32
  }
}

</mosaic_0001>

<llo_original>
// kernel: tpu_custom_call.1
$region0: #{tpu_custom_call.1}
  #allocation0 [shape = 'u32[]', space=smem, size = 0x4, offset = 0x4, fixed_abs, tag = 'smem constant byte address 0x4 - core index']
  #allocation1 [shape = 'u32[72,128]{1,0:T(1,128)}', space=vmem, size = 0x9000, scoped, tag = 'internal scratch']
  #allocation2 [shape = 'f32[2,128]{1,0:T(2,128)}', space=vmem, size = 0x400, scoped, tag = 'scratch operand']
  %s0 = inlined_call_operand.hbm [shape: f32[2,1024], index: 0, kind: input, shape index: {}]
  %s1 = inlined_call_operand.hbm [shape: bf16[1024,128], index: 1, kind: input, shape index: {}]
  %s2 = inlined_call_operand.vmem [shape: f32[1,128], index: 2, kind: input, shape index: {}]
  %s3 = inlined_call_operand.hbm [shape: f32[2,128], index: 3, kind: output, shape index: {}]
  %s4 = sld [smem:[#allocation0]]
  $region38: #{tpu_custom_call.1} parent=0
    _
  %s6 = ssub.s32 1, %s4
  %s7 = scalar_select 0, %s6, %s4
  $region1: #{tpu_custom_call.1} parent=0
    #allocation3 [shape = 'u8[8192]{0}', space=vmem, size = 0x2000, scoped, tag = 'input window, operand 0, single buffered']
    #allocation4 [shape = 's32[1]{0}', space=sflag, size = 0x4, scoped, tag = 'scoped memory for tpu_custom_call.1']
    #allocation5 [shape = 's32[1]{0}', space=sflag, size = 0x4, scoped, tag = 'scoped memory for tpu_custom_call.1']
    #allocation6 [shape = 'u8[262144]{0}', space=vmem, size = 0x40000, scoped, tag = 'input window, operand 1, single buffered']
    #allocation7 [shape = 's32[1]{0}', space=sflag, size = 0x4, scoped, tag = 'scoped memory for tpu_custom_call.1']
    #allocation8 [shape = 'u8[1024]{0}', space=vmem, size = 0x400, scoped, tag = 'output window, operand 0, single buffered']
    %8 = vsyncpa [#allocation4], 0
    %9 = vsyncpa [#allocation7], 0
    %10 = vsyncpa [#allocation5], 0
    // Predicated region
    $region2: #{tpu_custom_call.1} parent=1 // pred_check
      _
    $region3: #{tpu_custom_call.1} parent=1 // pred_check_branch
      %12 = sbr.rel (0) target = $region5
    $region4: #{tpu_custom_call.1} parent=1 // pred_region
      %14 = vsyncadd [#allocation4], 0
      %s16 = sshll.u32 %s0, 4
      %s17 = int_to_ptr.hbm [resolvable:$true] %s16
      %s18 = sshll.u32 [#allocation3], 4
      %s19 = int_to_ptr.vmem [resolvable:$true] %s18
      %21 = dma.hbm_to_vmem [thread:$0]  %s17, 256, %s19, [#allocation4]
    $region5: #{tpu_custom_call.1} parent=1 // pred_fallthru
      _
    // Predicated region
    $region6: #{tpu_custom_call.1} parent=1 // pred_check
      _
    $region7: #{tpu_custom_call.1} parent=1 // pred_check_branch
      %23 = sbr.rel (0) target = $region9
    $region8: #{tpu_custom_call.1} parent=1 // pred_region
      %25 = vsyncadd [#allocation7], 0
      %s26 = sshll.u32 %s1, 4
      %s27 = int_to_ptr.hbm [resolvable:$true] %s26
      %s28 = sshll.u32 [#allocation6], 4
      %s29 = int_to_ptr.vmem [resolvable:$true] %s28
      %34 = dma.hbm_to_vmem [thread:$0]  %s27, 8192, %s29, [#allocation7], 64, 64, 4
    $region9: #{tpu_custom_call.1} parent=1 // pred_fallthru
      _
    // Predicated region
    $region10: #{tpu_custom_call.1} parent=1 // pred_check
      _
    $region11: #{tpu_custom_call.1} parent=1 // pred_check_branch
      %36 = sbr.rel (0) target = $region13
    $region12: #{tpu_custom_call.1} parent=1 // pred_region
      _
    $region13: #{tpu_custom_call.1} parent=1 // pred_fallthru
      _
    // Predicated region
    $region14: #{tpu_custom_call.1} parent=1 // pred_check
      _
    $region15: #{tpu_custom_call.1} parent=1 // pred_check_branch
      %38 = sbr.rel (0) target = $region17
    $region16: #{tpu_custom_call.1} parent=1 // pred_region
      %40 = dma.done [#allocation4], 256
    $region17: #{tpu_custom_call.1} parent=1 // pred_fallthru
      _
    // Predicated region
    $region18: #{tpu_custom_call.1} parent=1 // pred_check
      _
    $region19: #{tpu_custom_call.1} parent=1 // pred_check_branch
      %42 = sbr.rel (0) target = $region21
    $region20: #{tpu_custom_call.1} parent=1 // pred_region
      %44 = dma.done [#allocation7], 8192
    $region21: #{tpu_custom_call.1} parent=1 // pred_fallthru
      _
    %p45 = scmp.eq.s32.totalorder 0, 0
    // Predicated region
    $region22: #{tpu_custom_call.1} parent=1 // pred_check
      %p46 = pneg %p45
    $region23: #{tpu_custom_call.1} parent=1 // pred_check_branch
      %48 = sbr.rel (%p46) target = $region25
    $region24: #{tpu_custom_call.1} parent=1 // pred_region
      %v49 = vld [vmem:[%s2] sm:$0x1]
      %v51 = vperm.slane %v49, 0
      %53 = vst [vmem:[#allocation2] sm:$0x3] %v51
    $region25: #{tpu_custom_call.1} parent=1 // pred_fallthru
      _
    %v54 = vld [vmem:[#allocation2] sm:$0x3]
    %v55 = vld [vmem:[#allocation3] sm:$0xff]
    %v56 = vld [vmem:[#allocation3 + $0x8] sm:$0xff]
    %59 = vst [vmem:[#allocation1] ss:$4 sm:$0xff] %v55
    %s60 = scalar_lea.vmem [#allocation1], 32
    %61 = vst [vmem:[%s60] ss:$4 sm:$0xff] %v56
    %v62 = vld.sshfl [vmem:[#allocation1] sm:$0xff pattern:$0x73625140]
    %v63 = vld.sshfl [vmem:[#allocation1 + $0x8] sm:$0xff pattern:$0x73625140]
    %v64 = vld.sshfl [vmem:[#allocation1 + $0x10] sm:$0xff pattern:$0x73625140]
    %v65 = vld.sshfl [vmem:[#allocation1 + $0x18] sm:$0xff pattern:$0x73625140]
    %v66 = vld.sshfl [vmem:[#allocation1 + $0x20] sm:$0xff pattern:$0x73625140]
    %v67 = vld.sshfl [vmem:[#allocation1 + $0x28] sm:$0xff pattern:$0x73625140]
    %v68 = vld.sshfl [vmem:[#allocation1 + $0x30] sm:$0xff pattern:$0x73625140]
    %v69 = vld.sshfl [vmem:[#allocation1 + $0x38] sm:$0xff pattern:$0x73625140]
    %v78 = vpack.c.bf16 %v62, %v62
    %v79 = vpack.c.bf16 %v63, %v63
    %v80 = vpack.c.bf16 %v64, %v64
    %v81 = vpack.c.bf16 %v65, %v65
    %v82 = vpack.c.bf16 %v66, %v66
    %v83 = vpack.c.bf16 %v67, %v67
    %v84 = vpack.c.bf16 %v68, %v68
    %v85 = vpack.c.bf16 %v69, %v69
    %v86 = vld [vmem:[#allocation6] sm:$0xf]
    %v87 = vld [vmem:[#allocation6 + $0x4] sm:$0xf]
    %v88 = vld [vmem:[#allocation6 + $0x8] sm:$0xf]
    %v89 = vld [vmem:[#allocation6 + $0xc] sm:$0xf]
    %v90 = vld [vmem:[#allocation6 + $0x10] sm:$0xf]
    %v91 = vld [vmem:[#allocation6 + $0x14] sm:$0xf]
    %v92 = vld [vmem:[#allocation6 + $0x18] sm:$0xf]
    %v93 = vld [vmem:[#allocation6 + $0x1c] sm:$0xf]
    %v94 = vld [vmem:[#allocation6 + $0x20] sm:$0xf]
    %v95 = vld [vmem:[#allocation6 + $0x24] sm:$0xf]
    %v96 = vld [vmem:[#allocation6 + $0x28] sm:$0xf]
    %v97 = vld [vmem:[#allocation6 + $0x2c] sm:$0xf]
    %v98 = vld [vmem:[#allocation6 + $0x30] sm:$0xf]
    %v99 = vld [vmem:[#allocation6 + $0x34] sm:$0xf]
    %v100 = vld [vmem:[#allocation6 + $0x38] sm:$0xf]
    %v101 = vld [vmem:[#allocation6 + $0x3c] sm:$0xf]
    %v102 = vld [vmem:[#allocation6 + $0x40] sm:$0xf]
    %v103 = vld [vmem:[#allocation6 + $0x44] sm:$0xf]
    %v104 = vld [vmem:[#allocation6 + $0x48] sm:$0xf]
    %v105 = vld [vmem:[#allocation6 + $0x4c] sm:$0xf]
    %v106 = vld [vmem:[#allocation6 + $0x50] sm:$0xf]
    %v107 = vld [vmem:[#allocation6 + $0x54] sm:$0xf]
    %v108 = vld [vmem:[#allocation6 + $0x58] sm:$0xf]
    %v109 = vld [vmem:[#allocation6 + $0x5c] sm:$0xf]
    %v110 = vld [vmem:[#allocation6 + $0x60] sm:$0xf]
    %v111 = vld [vmem:[#allocation6 + $0x64] sm:$0xf]
    %v112 = vld [vmem:[#allocation6 + $0x68] sm:$0xf]
    %v113 = vld [vmem:[#allocation6 + $0x6c] sm:$0xf]
    %v114 = vld [vmem:[#allocation6 + $0x70] sm:$0xf]
    %v115 = vld [vmem:[#allocation6 + $0x74] sm:$0xf]
    %v116 = vld [vmem:[#allocation6 + $0x78] sm:$0xf]
    %v117 = vld [vmem:[#allocation6 + $0x7c] sm:$0xf]
    %v118 = vld [vmem:[#allocation6 + $0x80] sm:$0xf]
    %v119 = vld [vmem:[#allocation6 + $0x84] sm:$0xf]
    %v120 = vld [vmem:[#allocation6 + $0x88] sm:$0xf]
    %v121 = vld [vmem:[#allocation6 + $0x8c] sm:$0xf]
    %v122 = vld [vmem:[#allocation6 + $0x90] sm:$0xf]
    %v123 = vld [vmem:[#allocation6 + $0x94] sm:$0xf]
    %v124 = vld [vmem:[#allocation6 + $0x98] sm:$0xf]
    %v125 = vld [vmem:[#allocation6 + $0x9c] sm:$0xf]
    %v126 = vld [vmem:[#allocation6 + $0xa0] sm:$0xf]
    %v127 = vld [vmem:[#allocation6 + $0xa4] sm:$0xf]
    %v128 = vld [vmem:[#allocation6 + $0xa8] sm:$0xf]
    %v129 = vld [vmem:[#allocation6 + $0xac] sm:$0xf]
    %v130 = vld [vmem:[#allocation6 + $0xb0] sm:$0xf]
    %v131 = vld [vmem:[#allocation6 + $0xb4] sm:$0xf]
    %v132 = vld [vmem:[#allocation6 + $0xb8] sm:$0xf]
    %v133 = vld [vmem:[#allocation6 + $0xbc] sm:$0xf]
    %v134 = vld [vmem:[#allocation6 + $0xc0] sm:$0xf]
    %v135 = vld [vmem:[#allocation6 + $0xc4] sm:$0xf]
    %v136 = vld [vmem:[#allocation6 + $0xc8] sm:$0xf]
    %v137 = vld [vmem:[#allocation6 + $0xcc] sm:$0xf]
    %v138 = vld [vmem:[#allocation6 + $0xd0] sm:$0xf]
    %v139 = vld [vmem:[#allocation6 + $0xd4] sm:$0xf]
    %v140 = vld [vmem:[#allocation6 + $0xd8] sm:$0xf]
    %v141 = vld [vmem:[#allocation6 + $0xdc] sm:$0xf]
    %v142 = vld [vmem:[#allocation6 + $0xe0] sm:$0xf]
    %v143 = vld [vmem:[#allocation6 + $0xe4] sm:$0xf]
    %v144 = vld [vmem:[#allocation6 + $0xe8] sm:$0xf]
    %v145 = vld [vmem:[#allocation6 + $0xec] sm:$0xf]
    %v146 = vld [vmem:[#allocation6 + $0xf0] sm:$0xf]
    %v147 = vld [vmem:[#allocation6 + $0xf4] sm:$0xf]
    %v148 = vld [vmem:[#allocation6 + $0xf8] sm:$0xf]
    %v149 = vld [vmem:[#allocation6 + $0xfc] sm:$0xf]
    %v150 = vld [vmem:[#allocation6 + $0x100] sm:$0xf]
    %v151 = vld [vmem:[#allocation6 + $0x104] sm:$0xf]
    %v152 = vld [vmem:[#allocation6 + $0x108] sm:$0xf]
    %v153 = vld [vmem:[#allocation6 + $0x10c] sm:$0xf]
    %v154 = vld [vmem:[#allocation6 + $0x110] sm:$0xf]
    %v155 = vld [vmem:[#allocation6 + $0x114] sm:$0xf]
    %v156 = vld [vmem:[#allocation6 + $0x118] sm:$0xf]
    %v157 = vld [vmem:[#allocation6 + $0x11c] sm:$0xf]
    %v158 = vld [vmem:[#allocation6 + $0x120] sm:$0xf]
    %v159 = vld [vmem:[#allocation6 + $0x124] sm:$0xf]
    %v160 = vld [vmem:[#allocation6 + $0x128] sm:$0xf]
    %v161 = vld [vmem:[#allocation6 + $0x12c] sm:$0xf]
    %v162 = vld [vmem:[#allocation6 + $0x130] sm:$0xf]
    %v163 = vld [vmem:[#allocation6 + $0x134] sm:$0xf]
    %v164 = vld [vmem:[#allocation6 + $0x138] sm:$0xf]
    %v165 = vld [vmem:[#allocation6 + $0x13c] sm:$0xf]
    %v166 = vld [vmem:[#allocation6 + $0x140] sm:$0xf]
    %v167 = vld [vmem:[#allocation6 + $0x144] sm:$0xf]
    %v168 = vld [vmem:[#allocation6 + $0x148] sm:$0xf]
    %v169 = vld [vmem:[#allocation6 + $0x14c] sm:$0xf]
    %v170 = vld [vmem:[#allocation6 + $0x150] sm:$0xf]
    %v171 = vld [vmem:[#allocation6 + $0x154] sm:$0xf]
    %v172 = vld [vmem:[#allocation6 + $0x158] sm:$0xf]
    %v173 = vld [vmem:[#allocation6 + $0x15c] sm:$0xf]
    %v174 = vld [vmem:[#allocation6 + $0x160] sm:$0xf]
    %v175 = vld [vmem:[#allocation6 + $0x164] sm:$0xf]
    %v176 = vld [vmem:[#allocation6 + $0x168] sm:$0xf]
    %v177 = vld [vmem:[#allocation6 + $0x16c] sm:$0xf]
    %v178 = vld [vmem:[#allocation6 + $0x170] sm:$0xf]
    %v179 = vld [vmem:[#allocation6 + $0x174] sm:$0xf]
    %v180 = vld [vmem:[#allocation6 + $0x178] sm:$0xf]
    %v181 = vld [vmem:[#allocation6 + $0x17c] sm:$0xf]
    %v182 = vld [vmem:[#allocation6 + $0x180] sm:$0xf]
    %v183 = vld [vmem:[#allocation6 + $0x184] sm:$0xf]
    %v184 = vld [vmem:[#allocation6 + $0x188] sm:$0xf]
    %v185 = vld [vmem:[#allocation6 + $0x18c] sm:$0xf]
    %v186 = vld [vmem:[#allocation6 + $0x190] sm:$0xf]
    %v187 = vld [vmem:[#allocation6 + $0x194] sm:$0xf]
    %v188 = vld [vmem:[#allocation6 + $0x198] sm:$0xf]
    %v189 = vld [vmem:[#allocation6 + $0x19c] sm:$0xf]
    %v190 = vld [vmem:[#allocation6 + $0x1a0] sm:$0xf]
    %v191 = vld [vmem:[#allocation6 + $0x1a4] sm:$0xf]
    %v192 = vld [vmem:[#allocation6 + $0x1a8] sm:$0xf]
    %v193 = vld [vmem:[#allocation6 + $0x1ac] sm:$0xf]
    %v194 = vld [vmem:[#allocation6 + $0x1b0] sm:$0xf]
    %v195 = vld [vmem:[#allocation6 + $0x1b4] sm:$0xf]
    %v196 = vld [vmem:[#allocation6 + $0x1b8] sm:$0xf]
    %v197 = vld [vmem:[#allocation6 + $0x1bc] sm:$0xf]
    %v198 = vld [vmem:[#allocation6 + $0x1c0] sm:$0xf]
    %v199 = vld [vmem:[#allocation6 + $0x1c4] sm:$0xf]
    %v200 = vld [vmem:[#allocation6 + $0x1c8] sm:$0xf]
    %v201 = vld [vmem:[#allocation6 + $0x1cc] sm:$0xf]
    %v202 = vld [vmem:[#allocation6 + $0x1d0] sm:$0xf]
    %v203 = vld [vmem:[#allocation6 + $0x1d4] sm:$0xf]
    %v204 = vld [vmem:[#allocation6 + $0x1d8] sm:$0xf]
    %v205 = vld [vmem:[#allocation6 + $0x1dc] sm:$0xf]
    %v206 = vld [vmem:[#allocation6 + $0x1e0] sm:$0xf]
    %v207 = vld [vmem:[#allocation6 + $0x1e4] sm:$0xf]
    %v208 = vld [vmem:[#allocation6 + $0x1e8] sm:$0xf]
    %v209 = vld [vmem:[#allocation6 + $0x1ec] sm:$0xf]
    %v210 = vld [vmem:[#allocation6 + $0x1f0] sm:$0xf]
    %v211 = vld [vmem:[#allocation6 + $0x1f4] sm:$0xf]
    %v212 = vld [vmem:[#allocation6 + $0x1f8] sm:$0xf]
    %v213 = vld [vmem:[#allocation6 + $0x1fc] sm:$0xf]
    %v342 = vunpack.c.l.b16 %v86
    %v343 = vunpack.c.l.b16 %v87
    %v344 = vunpack.c.l.b16 %v88
    %v345 = vunpack.c.l.b16 %v89
    %v346 = vunpack.c.l.b16 %v90
    %v347 = vunpack.c.l.b16 %v91
    %v348 = vunpack.c.l.b16 %v92
    %v349 = vunpack.c.l.b16 %v93
    %v350 = vunpack.c.l.b16 %v94
    %v351 = vunpack.c.l.b16 %v95
    %v352 = vunpack.c.l.b16 %v96
    %v353 = vunpack.c.l.b16 %v97
    %v354 = vunpack.c.l.b16 %v98
    %v355 = vunpack.c.l.b16 %v99
    %v356 = vunpack.c.l.b16 %v100
    %v357 = vunpack.c.l.b16 %v101
    %v358 = vunpack.c.l.b16 %v102
    %v359 = vunpack.c.l.b16 %v103
    %v360 = vunpack.c.l.b16 %v104
    %v361 = vunpack.c.l.b16 %v105
    %v362 = vunpack.c.l.b16 %v106
    %v363 = vunpack.c.l.b16 %v107
    %v364 = vunpack.c.l.b16 %v108
    %v365 = vunpack.c.l.b16 %v109
    %v366 = vunpack.c.l.b16 %v110
    %v367 = vunpack.c.l.b16 %v111
    %v368 = vunpack.c.l.b16 %v112
    %v369 = vunpack.c.l.b16 %v113
    %v370 = vunpack.c.l.b16 %v114
    %v371 = vunpack.c.l.b16 %v115
    %v372 = vunpack.c.l.b16 %v116
    %v373 = vunpack.c.l.b16 %v117
    %v374 = vunpack.c.l.b16 %v118
    %v375 = vunpack.c.l.b16 %v119
    %v376 = vunpack.c.l.b16 %v120
    %v377 = vunpack.c.l.b16 %v121
    %v378 = vunpack.c.l.b16 %v122
    %v379 = vunpack.c.l.b16 %v123
    %v380 = vunpack.c.l.b16 %v124
    %v381 = vunpack.c.l.b16 %v125
    %v382 = vunpack.c.l.b16 %v126
    %v383 = vunpack.c.l.b16 %v127
    %v384 = vunpack.c.l.b16 %v128
    %v385 = vunpack.c.l.b16 %v129
    %v386 = vunpack.c.l.b16 %v130
    %v387 = vunpack.c.l.b16 %v131
    %v388 = vunpack.c.l.b16 %v132
    %v389 = vunpack.c.l.b16 %v133
    %v390 = vunpack.c.l.b16 %v134
    %v391 = vunpack.c.l.b16 %v135
    %v392 = vunpack.c.l.b16 %v136
    %v393 = vunpack.c.l.b16 %v137
    %v394 = vunpack.c.l.b16 %v138
    %v395 = vunpack.c.l.b16 %v139
    %v396 = vunpack.c.l.b16 %v140
    %v397 = vunpack.c.l.b16 %v141
    %v398 = vunpack.c.l.b16 %v142
    %v399 = vunpack.c.l.b16 %v143
    %v400 = vunpack.c.l.b16 %v144
    %v401 = vunpack.c.l.b16 %v145
    %v402 = vunpack.c.l.b16 %v146
    %v403 = vunpack.c.l.b16 %v147
    %v404 = vunpack.c.l.b16 %v148
    %v405 = vunpack.c.l.b16 %v149
    %v406 = vunpack.c.l.b16 %v150
    %v407 = vunpack.c.l.b16 %v151
    %v408 = vunpack.c.l.b16 %v152
    %v409 = vunpack.c.l.b16 %v153
    %v410 = vunpack.c.l.b16 %v154
    %v411 = vunpack.c.l.b16 %v155
    %v412 = vunpack.c.l.b16 %v156
    %v413 = vunpack.c.l.b16 %v157
    %v414 = vunpack.c.l.b16 %v158
    %v415 = vunpack.c.l.b16 %v159
    %v416 = vunpack.c.l.b16 %v160
    %v417 = vunpack.c.l.b16 %v161
    %v418 = vunpack.c.l.b16 %v162
    %v419 = vunpack.c.l.b16 %v163
    %v420 = vunpack.c.l.b16 %v164
    %v421 = vunpack.c.l.b16 %v165
    %v422 = vunpack.c.l.b16 %v166
    %v423 = vunpack.c.l.b16 %v167
    %v424 = vunpack.c.l.b16 %v168
    %v425 = vunpack.c.l.b16 %v169
    %v426 = vunpack.c.l.b16 %v170
    %v427 = vunpack.c.l.b16 %v171
    %v428 = vunpack.c.l.b16 %v172
    %v429 = vunpack.c.l.b16 %v173
    %v430 = vunpack.c.l.b16 %v174
    %v431 = vunpack.c.l.b16 %v175
    %v432 = vunpack.c.l.b16 %v176
    %v433 = vunpack.c.l.b16 %v177
    %v434 = vunpack.c.l.b16 %v178
    %v435 = vunpack.c.l.b16 %v179
    %v436 = vunpack.c.l.b16 %v180
    %v437 = vunpack.c.l.b16 %v181
    %v438 = vunpack.c.l.b16 %v182
    %v439 = vunpack.c.l.b16 %v183
    %v440 = vunpack.c.l.b16 %v184
    %v441 = vunpack.c.l.b16 %v185
    %v442 = vunpack.c.l.b16 %v186
    %v443 = vunpack.c.l.b16 %v187
    %v444 = vunpack.c.l.b16 %v188
    %v445 = vunpack.c.l.b16 %v189
    %v446 = vunpack.c.l.b16 %v190
    %v447 = vunpack.c.l.b16 %v191
    %v448 = vunpack.c.l.b16 %v192
    %v449 = vunpack.c.l.b16 %v193
    %v450 = vunpack.c.l.b16 %v194
    %v451 = vunpack.c.l.b16 %v195
    %v452 = vunpack.c.l.b16 %v196
    %v453 = vunpack.c.l.b16 %v197
    %v454 = vunpack.c.l.b16 %v198
    %v455 = vunpack.c.l.b16 %v199
    %v456 = vunpack.c.l.b16 %v200
    %v457 = vunpack.c.l.b16 %v201
    %v458 = vunpack.c.l.b16 %v202
    %v459 = vunpack.c.l.b16 %v203
    %v460 = vunpack.c.l.b16 %v204
    %v461 = vunpack.c.l.b16 %v205
    %v462 = vunpack.c.l.b16 %v206
    %v463 = vunpack.c.l.b16 %v207
    %v464 = vunpack.c.l.b16 %v208
    %v465 = vunpack.c.l.b16 %v209
    %v466 = vunpack.c.l.b16 %v210
    %v467 = vunpack.c.l.b16 %v211
    %v468 = vunpack.c.l.b16 %v212
    %v469 = vunpack.c.l.b16 %v213
    %v470 = vpack.c.b16 %v343, %v342
    %v471 = vpack.c.b16 %v345, %v344
    %v472 = vpack.c.b16 %v347, %v346
    %v473 = vpack.c.b16 %v349, %v348
    %v474 = vpack.c.b16 %v351, %v350
    %v475 = vpack.c.b16 %v353, %v352
    %v476 = vpack.c.b16 %v355, %v354
    %v477 = vpack.c.b16 %v357, %v356
    %v478 = vpack.c.b16 %v359, %v358
    %v479 = vpack.c.b16 %v361, %v360
    %v480 = vpack.c.b16 %v363, %v362
    %v481 = vpack.c.b16 %v365, %v364
    %v482 = vpack.c.b16 %v367, %v366
    %v483 = vpack.c.b16 %v369, %v368
    %v484 = vpack.c.b16 %v371, %v370
    %v485 = vpack.c.b16 %v373, %v372
    %v486 = vpack.c.b16 %v375, %v374
    %v487 = vpack.c.b16 %v377, %v376
    %v488 = vpack.c.b16 %v379, %v378
    %v489 = vpack.c.b16 %v381, %v380
    %v490 = vpack.c.b16 %v383, %v382
    %v491 = vpack.c.b16 %v385, %v384
    %v492 = vpack.c.b16 %v387, %v386
    %v493 = vpack.c.b16 %v389, %v388
    %v494 = vpack.c.b16 %v391, %v390
    %v495 = vpack.c.b16 %v393, %v392
    %v496 = vpack.c.b16 %v395, %v394
    %v497 = vpack.c.b16 %v397, %v396
    %v498 = vpack.c.b16 %v399, %v398
    %v499 = vpack.c.b16 %v401, %v400
    %v500 = vpack.c.b16 %v403, %v402
    %v501 = vpack.c.b16 %v405, %v404
    %v502 = vpack.c.b16 %v407, %v406
    %v503 = vpack.c.b16 %v409, %v408
    %v504 = vpack.c.b16 %v411, %v410
    %v505 = vpack.c.b16 %v413, %v412
    %v506 = vpack.c.b16 %v415, %v414
    %v507 = vpack.c.b16 %v417, %v416
    %v508 = vpack.c.b16 %v419, %v418
    %v509 = vpack.c.b16 %v421, %v420
    %v510 = vpack.c.b16 %v423, %v422
    %v511 = vpack.c.b16 %v425, %v424
    %v512 = vpack.c.b16 %v427, %v426
    %v513 = vpack.c.b16 %v429, %v428
    %v514 = vpack.c.b16 %v431, %v430
    %v515 = vpack.c.b16 %v433, %v432
    %v516 = vpack.c.b16 %v435, %v434
    %v517 = vpack.c.b16 %v437, %v436
    %v518 = vpack.c.b16 %v439, %v438
    %v519 = vpack.c.b16 %v441, %v440
    %v520 = vpack.c.b16 %v443, %v442
    %v521 = vpack.c.b16 %v445, %v444
    %v522 = vpack.c.b16 %v447, %v446
    %v523 = vpack.c.b16 %v449, %v448
    %v524 = vpack.c.b16 %v451, %v450
    %v525 = vpack.c.b16 %v453, %v452
    %v526 = vpack.c.b16 %v455, %v454
    %v527 = vpack.c.b16 %v457, %v456
    %v528 = vpack.c.b16 %v459, %v458
    %v529 = vpack.c.b16 %v461, %v460
    %v530 = vpack.c.b16 %v463, %v462
    %v531 = vpack.c.b16 %v465, %v464
    %v532 = vpack.c.b16 %v467, %v466
    %v533 = vpack.c.b16 %v469, %v468
    %598 = vmatpush.bf16.msra.mxu0 %v477
    %599 = vmatpush.bf16.msra.mxu0 %v476
    %600 = vmatpush.bf16.msra.mxu0 %v475
    %601 = vmatpush.bf16.msra.mxu0 %v474
    %602 = vmatpush.bf16.msra.mxu0 %v473
    %603 = vmatpush.bf16.msra.mxu0 %v472
    %604 = vmatpush.bf16.msra.mxu0 %v471
    %605 = vmatpush.bf16.msra.mxu0 %v470
    %606 = vmatmul.bf16.gmra.mxu0 %v78
    %v607 = vpop.f32.mrf.mxu0
    %v608 = vadd.f32 0.0, %v607
    %v609 = vpop.f32.mrf.mxu0
    %610 = vdwg.mxu0
    %611 = vmatpush.bf16.msra.mxu0 %v485
    %612 = vmatpush.bf16.msra.mxu0 %v484
    %613 = vmatpush.bf16.msra.mxu0 %v483
    %614 = vmatpush.bf16.msra.mxu0 %v482
    %615 = vmatpush.bf16.msra.mxu0 %v481
    %616 = vmatpush.bf16.msra.mxu0 %v480
    %617 = vmatpush.bf16.msra.mxu0 %v479
    %618 = vmatpush.bf16.msra.mxu0 %v478
    %619 = vmatmul.bf16.gmra.mxu0 %v79
    %v620 = vpop.f32.mrf.mxu0
    %v621 = vadd.f32 %v608, %v620
    %v622 = vpop.f32.mrf.mxu0
    %623 = vdwg.mxu0
    %624 = vmatpush.bf16.msra.mxu0 %v493
    %625 = vmatpush.bf16.msra.mxu0 %v492
    %626 = vmatpush.bf16.msra.mxu0 %v491
    %627 = vmatpush.bf16.msra.mxu0 %v490
    %628 = vmatpush.bf16.msra.mxu0 %v489
    %629 = vmatpush.bf16.msra.mxu0 %v488
    %630 = vmatpush.bf16.msra.mxu0 %v487
    %631 = vmatpush.bf16.msra.mxu0 %v486
    %632 = vmatmul.bf16.gmra.mxu0 %v80
    %v633 = vpop.f32.mrf.mxu0
    %v634 = vadd.f32 %v621, %v633
    %v635 = vpop.f32.mrf.mxu0
    %636 = vdwg.mxu0
    %637 = vmatpush.bf16.msra.mxu0 %v501
    %638 = vmatpush.bf16.msra.mxu0 %v500
    %639 = vmatpush.bf16.msra.mxu0 %v499
    %640 = vmatpush.bf16.msra.mxu0 %v498
    %641 = vmatpush.bf16.msra.mxu0 %v497
    %642 = vmatpush.bf16.msra.mxu0 %v496
    %643 = vmatpush.bf16.msra.mxu0 %v495
    %644 = vmatpush.bf16.msra.mxu0 %v494
    %645 = vmatmul.bf16.gmra.mxu0 %v81
    %v646 = vpop.f32.mrf.mxu0
    %v647 = vadd.f32 %v634, %v646
    %v648 = vpop.f32.mrf.mxu0
    %649 = vdwg.mxu0
    %650 = vmatpush.bf16.msra.mxu0 %v509
    %651 = vmatpush.bf16.msra.mxu0 %v508
    %652 = vmatpush.bf16.msra.mxu0 %v507
    %653 = vmatpush.bf16.msra.mxu0 %v506
    %654 = vmatpush.bf16.msra.mxu0 %v505
    %655 = vmatpush.bf16.msra.mxu0 %v504
    %656 = vmatpush.bf16.msra.mxu0 %v503
    %657 = vmatpush.bf16.msra.mxu0 %v502
    %658 = vmatmul.bf16.gmra.mxu0 %v82
    %v659 = vpop.f32.mrf.mxu0
    %v660 = vadd.f32 %v647, %v659
    %v661 = vpop.f32.mrf.mxu0
    %662 = vdwg.mxu0
    %663 = vmatpush.bf16.msra.mxu0 %v517
    %664 = vmatpush.bf16.msra.mxu0 %v516
    %665 = vmatpush.bf16.msra.mxu0 %v515
    %666 = vmatpush.bf16.msra.mxu0 %v514
    %667 = vmatpush.bf16.msra.mxu0 %v513
    %668 = vmatpush.bf16.msra.mxu0 %v512
    %669 = vmatpush.bf16.msra.mxu0 %v511
    %670 = vmatpush.bf16.msra.mxu0 %v510
    %671 = vmatmul.bf16.gmra.mxu0 %v83
    %v672 = vpop.f32.mrf.mxu0
    %v673 = vadd.f32 %v660, %v672
    %v674 = vpop.f32.mrf.mxu0
    %675 = vdwg.mxu0
    %676 = vmatpush.bf16.msra.mxu0 %v525
    %677 = vmatpush.bf16.msra.mxu0 %v524
    %678 = vmatpush.bf16.msra.mxu0 %v523
    %679 = vmatpush.bf16.msra.mxu0 %v522
    %680 = vmatpush.bf16.msra.mxu0 %v521
    %681 = vmatpush.bf16.msra.mxu0 %v520
    %682 = vmatpush.bf16.msra.mxu0 %v519
    %683 = vmatpush.bf16.msra.mxu0 %v518
    %684 = vmatmul.bf16.gmra.mxu0 %v84
    %v685 = vpop.f32.mrf.mxu0
    %v686 = vadd.f32 %v673, %v685
    %v687 = vpop.f32.mrf.mxu0
    %688 = vdwg.mxu0
    %689 = vmatpush.bf16.msra.mxu0 %v533
    %690 = vmatpush.bf16.msra.mxu0 %v532
    %691 = vmatpush.bf16.msra.mxu0 %v531
    %692 = vmatpush.bf16.msra.mxu0 %v530
    %693 = vmatpush.bf16.msra.mxu0 %v529
    %694 = vmatpush.bf16.msra.mxu0 %v528
    %695 = vmatpush.bf16.msra.mxu0 %v527
    %696 = vmatpush.bf16.msra.mxu0 %v526
    %697 = vmatmul.bf16.gmra.mxu0 %v85
    %v698 = vpop.f32.mrf.mxu0
    %v699 = vadd.f32 %v686, %v698
    %v700 = vpop.f32.mrf.mxu0
    %701 = vdwg.mxu0
    %v702 = vadd.f32 %v54, %v699
    %703 = vst [vmem:[#allocation2] sm:$0x3] %v702
    // Predicated region
    $region26: #{tpu_custom_call.1} parent=1 // pred_check
      %p704 = pneg %p45
    $region27: #{tpu_custom_call.1} parent=1 // pred_check_branch
      %706 = sbr.rel (%p704) target = $region29
    $region28: #{tpu_custom_call.1} parent=1 // pred_region
      %v707 = vld [vmem:[#allocation2] sm:$0x3]
      %708 = vst [vmem:[#allocation8] sm:$0x3] %v707
    $region29: #{tpu_custom_call.1} parent=1 // pred_fallthru
      _
    // Predicated region
    $region30: #{tpu_custom_call.1} parent=1 // pred_check
      _
    $region31: #{tpu_custom_call.1} parent=1 // pred_check_branch
      %710 = sbr.rel (0) target = $region33
    $region32: #{tpu_custom_call.1} parent=1 // pred_region
      %712 = vsyncadd [#allocation5], 0
      %s714 = sshll.u32 [#allocation8], 4
      %s715 = int_to_ptr.vmem [resolvable:$true] %s714
      %s716 = sshll.u32 %s3, 4
      %s717 = int_to_ptr.hbm [resolvable:$true] %s716
      %719 = dma.vmem_to_hbm [thread:$0]  %s715, 32, %s717, [#allocation5]
    $region33: #{tpu_custom_call.1} parent=1 // pred_fallthru
      _
    // Predicated region
    $region34: #{tpu_custom_call.1} parent=1 // pred_check
      _
    $region35: #{tpu_custom_call.1} parent=1 // pred_check_branch
      %721 = sbr.rel (0) target = $region37
    $region36: #{tpu_custom_call.1} parent=1 // pred_region
      %723 = dma.done [#allocation5], 32
    $region37: #{tpu_custom_call.1} parent=1 // pred_fallthru
      _
    %724 = vsyncpa [#allocation4], 1
    %725 = vsyncpa [#allocation7], 1
    %726 = vsyncpa [#allocation5], 1

</llo_original>
